<compile_context>
chip_gen: v7x
topology: tpu7x:2x2x1
jax: 0.10.0
libtpu: 0.0.40
codegen_flags: <defaults>
</compile_context>

<pallas_src>
import jax
import jax.numpy as jnp
from jax.experimental import pallas as pl
from jax.experimental.pallas import tpu as pltpu


def fused_linear_add_relu_kernel(x_ref, wb_ref, other_ref, o_ref):
    # x:     (TB, IN)        batch-row block
    # wb:    (IN+1, OUT)     rows 0..IN-1 = W^T, row IN = bias
    # other: (TB, OUT)
    in_dim = x_ref.shape[1]                       # static (== 3)
    x = x_ref[...]
    wb = wb_ref[...]

    # bias (broadcast over rows) + residual, then the K=3 contraction as
    # unrolled VPU broadcast multiply-adds (no MXU).
    y = wb[in_dim:in_dim + 1, :] + other_ref[...]          # (1,OUT) bcast
    for k in range(in_dim):                                # unrolled at trace
        y = y + x[:, k:k + 1] * wb[k:k + 1, :]             # (TB,1)*(1,OUT)

    o_ref[...] = jnp.maximum(y, 0.0).astype(o_ref.dtype)


def _round_up(a, m):
    return (a + m - 1) // m * m


def fused_linear_add_relu(x, wb, other, *, block_b=512):
    """x:(B,IN)  wb:(IN+1,OUT) packed weight^T+bias  other:(B,OUT) -> (B,OUT)."""
    B, IN = x.shape
    OUT = wb.shape[1]
    assert wb.shape[0] == IN + 1
    assert other.shape == (B, OUT)

    # Fold/pad the batch: multiple of 8 (f32 sublanes), then of the row tile.
    tb = _round_up(min(block_b, max(8, _round_up(B, 8))), 8)
    b_pad = _round_up(max(B, 8), tb)
    if b_pad != B:
        pad = b_pad - B
        x = jnp.pad(x, ((0, pad), (0, 0)))
        other = jnp.pad(other, ((0, pad), (0, 0)))

    grid = (b_pad // tb,)

    flops = 2 * b_pad * IN * OUT + 2 * b_pad * OUT
    bytes_accessed = 4 * (b_pad * IN + (IN + 1) * OUT + 2 * b_pad * OUT)

    out = pl.pallas_call(
        fused_linear_add_relu_kernel,
        out_shape=jax.ShapeDtypeStruct((b_pad, OUT), x.dtype),
        grid=grid,
        in_specs=[
            pl.BlockSpec((tb, IN), lambda i: (i, 0)),          # batch block of x
            pl.BlockSpec((IN + 1, OUT), lambda i: (0, 0)),     # params, reused
            pl.BlockSpec((tb, OUT), lambda i: (i, 0)),         # batch block of other
        ],
        out_specs=pl.BlockSpec((tb, OUT), lambda i: (i, 0)),
        compiler_params=pltpu.CompilerParams(
            dimension_semantics=("parallel",)),                # 2 TCs on v7x
        cost_estimate=pl.CostEstimate(
            flops=flops, transcendentals=0, bytes_accessed=bytes_accessed),
    )(x, wb, other)

    return out[:B]


if __name__ == "__main__":
    key = jax.random.PRNGKey(0)
    k_x, k_other, k_w, k_b = jax.random.split(key, 4)

    B, IN, OUT = 1, 3, 8

    # Inputs (analogue of torch.randn(1, 3) / torch.randn(1, 8)).
    x = jax.random.normal(k_x, (B, IN), dtype=jnp.float32)
    other = jax.random.normal(k_other, (B, OUT), dtype=jnp.float32)

    # nn.Linear(3, 8)-style init: weight (OUT, IN), bias (OUT,),
    # uniform(-1/sqrt(IN), 1/sqrt(IN)).
    bound = 1.0 / (IN ** 0.5)
    weight = jax.random.uniform(k_w, (OUT, IN), jnp.float32, -bound, bound)
    bias = jax.random.uniform(k_b, (OUT,), jnp.float32, -bound, bound)

    # Parameter prep done ONCE at init time: pre-transposed weight with the
    # bias appended as the last row -> a single (IN+1, OUT) kernel input.
    wb = jnp.concatenate([weight.T, bias.reshape(1, OUT)], axis=0)

    # 1) Spec-shape call (B=1 -> padded to 8 rows inside the wrapper).
    out = fused_linear_add_relu(x, wb, other)
    jax.block_until_ready(out)

    ref = jnp.maximum(x @ weight.T + bias + other, 0.0)
    assert out.shape == (B, OUT)
    assert jnp.allclose(out, ref, atol=1e-5, rtol=1e-5)

    # 2) Folded-batch / gridded path (B=70, tb=16 -> grid=(5,), with padding).
    B2 = 70
    x2 = jax.random.normal(jax.random.PRNGKey(1), (B2, IN), dtype=jnp.float32)
    other2 = jax.random.normal(jax.random.PRNGKey(2), (B2, OUT), dtype=jnp.float32)
    out2 = fused_linear_add_relu(x2, wb, other2, block_b=16)
    jax.block_until_ready(out2)

    ref2 = jnp.maximum(x2 @ weight.T + bias + other2, 0.0)
    assert out2.shape == (B2, OUT)
    assert jnp.allclose(out2, ref2, atol=1e-5, rtol=1e-5)

    print("KERNEL_OK")
</pallas_src>

<mosaic_0001>
module attributes {stable_mosaic.version = 11 : i64} {
  func.func @fused_linear_add_relu_kernel(%arg0: i32, %arg1: memref<8x3xf32, #tpu.memory_space<vmem>>, %arg2: memref<4x8xf32, #tpu.memory_space<vmem>>, %arg3: memref<8x8xf32, #tpu.memory_space<vmem>>, %arg4: memref<8x8xf32, #tpu.memory_space<vmem>>) attributes {dimension_semantics = [#tpu.dimension_semantics<parallel>], iteration_bounds = array<i64: 1>, scalar_prefetch = 0 : i64, scratch_operands = 0 : i64, tpu.core_type = #tpu.core_type<tc>, window_params = [{transform_indices = @transform_0, window_bounds = array<i64: 8, 3>}, {pipeline_mode = #tpu.pipeline_mode<synchronous>, transform_indices = @transform_1, window_bounds = array<i64: 4, 8>}, {transform_indices = @transform_2, window_bounds = array<i64: 8, 8>}, {transform_indices = @transform_3, window_bounds = array<i64: 8, 8>}]} {
    %c0 = arith.constant 0 : index
    %c0_0 = arith.constant 0 : index
    %0 = vector.load %arg1[%c0, %c0_0] : memref<8x3xf32, #tpu.memory_space<vmem>>, vector<8x3xf32>
    %c0_1 = arith.constant 0 : index
    %c0_2 = arith.constant 0 : index
    %1 = vector.load %arg2[%c0_1, %c0_2] : memref<4x8xf32, #tpu.memory_space<vmem>>, vector<4x8xf32>
    %2 = vector.extract_strided_slice %1 {offsets = [3, 0], sizes = [1, 8], strides = [1, 1]} : vector<4x8xf32> to vector<1x8xf32>
    %c0_3 = arith.constant 0 : index
    %c0_4 = arith.constant 0 : index
    %3 = vector.load %arg3[%c0_3, %c0_4] : memref<8x8xf32, #tpu.memory_space<vmem>>, vector<8x8xf32>
    %4 = vector.broadcast %2 : vector<1x8xf32> to vector<8x8xf32>
    %5 = arith.addf %4, %3 : vector<8x8xf32>
    %6 = vector.extract_strided_slice %0 {offsets = [0, 0], sizes = [8, 1], strides = [1, 1]} : vector<8x3xf32> to vector<8x1xf32>
    %7 = vector.extract_strided_slice %1 {offsets = [0, 0], sizes = [1, 8], strides = [1, 1]} : vector<4x8xf32> to vector<1x8xf32>
    %8 = vector.broadcast %6 : vector<8x1xf32> to vector<8x8xf32>
    %9 = vector.broadcast %7 : vector<1x8xf32> to vector<8x8xf32>
    %10 = arith.mulf %8, %9 : vector<8x8xf32>
    %11 = arith.addf %5, %10 : vector<8x8xf32>
    %12 = vector.extract_strided_slice %0 {offsets = [0, 1], sizes = [8, 1], strides = [1, 1]} : vector<8x3xf32> to vector<8x1xf32>
    %13 = vector.extract_strided_slice %1 {offsets = [1, 0], sizes = [1, 8], strides = [1, 1]} : vector<4x8xf32> to vector<1x8xf32>
    %14 = vector.broadcast %12 : vector<8x1xf32> to vector<8x8xf32>
    %15 = vector.broadcast %13 : vector<1x8xf32> to vector<8x8xf32>
    %16 = arith.mulf %14, %15 : vector<8x8xf32>
    %17 = arith.addf %11, %16 : vector<8x8xf32>
    %18 = vector.extract_strided_slice %0 {offsets = [0, 2], sizes = [8, 1], strides = [1, 1]} : vector<8x3xf32> to vector<8x1xf32>
    %19 = vector.extract_strided_slice %1 {offsets = [2, 0], sizes = [1, 8], strides = [1, 1]} : vector<4x8xf32> to vector<1x8xf32>
    %20 = vector.broadcast %18 : vector<8x1xf32> to vector<8x8xf32>
    %21 = vector.broadcast %19 : vector<1x8xf32> to vector<8x8xf32>
    %22 = arith.mulf %20, %21 : vector<8x8xf32>
    %23 = arith.addf %17, %22 : vector<8x8xf32>
    %cst = arith.constant 0.000000e+00 : f32
    %24 = vector.broadcast %cst : f32 to vector<8x8xf32>
    %25 = arith.maximumf %23, %24 : vector<8x8xf32>
    %c0_5 = arith.constant 0 : index
    %c0_6 = arith.constant 0 : index
    %26 = vector.load %arg4[%c0_5, %c0_6] : memref<8x8xf32, #tpu.memory_space<vmem>>, vector<8x8xf32>
    tpu.vector_store %arg4[%c0_5, %c0_6], %25 {strides = array<i32>} : memref<8x8xf32, #tpu.memory_space<vmem>>, vector<8x8xf32>,
    return
  }
  func.func @transform_0(%arg0: i32) -> (i32, i32) {
    %c0_i32 = arith.constant 0 : i32
    %c0_i32_0 = arith.constant 0 : i32
    return %arg0, %c0_i32 : i32, i32
  }
  func.func @transform_1(%arg0: i32) -> (i32, i32) {
    %c0_i32 = arith.constant 0 : i32
    %c0_i32_0 = arith.constant 0 : i32
    %c0_i32_1 = arith.constant 0 : i32
    return %c0_i32, %c0_i32_0 : i32, i32
  }
  func.func @transform_2(%arg0: i32) -> (i32, i32) {
    %c0_i32 = arith.constant 0 : i32
    %c0_i32_0 = arith.constant 0 : i32
    return %arg0, %c0_i32 : i32, i32
  }
  func.func @transform_3(%arg0: i32) -> (i32, i32) {
    %c0_i32 = arith.constant 0 : i32
    %c0_i32_0 = arith.constant 0 : i32
    return %arg0, %c0_i32 : i32, i32
  }
}

</mosaic_0001>

<llo_original>
// kernel: tpu_custom_call.1
$region0: #{tpu_custom_call.1}
  #allocation0 [shape = 'u32[]', space=smem, size = 0x4, offset = 0x4, fixed_abs, tag = 'smem constant byte address 0x4 - core index']
  #allocation1 [shape = 'u32[144,128]{1,0:T(1,128)}', space=vmem, size = 0x12000, scoped, tag = 'internal scratch']
  %s0 = inlined_call_operand.vmem [shape: f32[8,3], index: 0, kind: input, shape index: {}]
  %s1 = inlined_call_operand.vmem [shape: f32[4,8], index: 1, kind: input, shape index: {}]
  %s2 = inlined_call_operand.vmem [shape: f32[8,8], index: 2, kind: input, shape index: {}]
  %s3 = inlined_call_operand.hbm [shape: f32[8,8], index: 3, kind: output, shape index: {}]
  %s4 = sld [smem:[#allocation0]]
  $region22: #{tpu_custom_call.1} parent=0
    _
  %s6 = ssub.s32 1, %s4
  %s7 = scalar_select 0, %s6, %s4
  $region1: #{tpu_custom_call.1} parent=0
    #allocation2 [shape = 'u8[4096]{0}', space=vmem, size = 0x1000, scoped, tag = 'output window, operand 0, single buffered']
    #allocation3 [shape = 's32[1]{0}', space=sflag, size = 0x4, scoped, tag = 'scoped memory for tpu_custom_call.1']
    %8 = vsyncpa [#allocation3], 0
    // Predicated region
    $region2: #{tpu_custom_call.1} parent=1 // pred_check
      _
    $region3: #{tpu_custom_call.1} parent=1 // pred_check_branch
      %10 = sbr.rel (0) target = $region5
    $region4: #{tpu_custom_call.1} parent=1 // pred_region
      _
    $region5: #{tpu_custom_call.1} parent=1 // pred_fallthru
      _
    // Predicated region
    $region6: #{tpu_custom_call.1} parent=1 // pred_check
      _
    $region7: #{tpu_custom_call.1} parent=1 // pred_check_branch
      %12 = sbr.rel (0) target = $region9
    $region8: #{tpu_custom_call.1} parent=1 // pred_region
      _
    $region9: #{tpu_custom_call.1} parent=1 // pred_fallthru
      _
    // Predicated region
    $region10: #{tpu_custom_call.1} parent=1 // pred_check
      _
    $region11: #{tpu_custom_call.1} parent=1 // pred_check_branch
      %14 = sbr.rel (0) target = $region13
    $region12: #{tpu_custom_call.1} parent=1 // pred_region
      _
    $region13: #{tpu_custom_call.1} parent=1 // pred_fallthru
      _
    %v15 = vld [vmem:[%s0] sm:$0xff]
    %v16 = vld [vmem:[%s1] sm:$0xf]
    %v17 = vld [vmem:[%s2] sm:$0xff]
    %v18 = vlaneseq
    %v19 = vshrl.u32 %v18, 7
    %v20 = vsub.s32 3, %v19
    %v21 = vrot.slane %v16, %v20
    %v22 = vadd.f32 %v21, %v17
    %24 = vset.pattern.permute.xlu0 0
    %25 = vperm.xlu0 %24, %v15
    %v26 = vpop.permute.xlu0 %25
    %v28 = vlaneseq
    %v29 = vshrl.u32 %v28, 7
    %v30 = vsub.s32 0, %v29
    %v31 = vrot.slane %v16, %v30
    %v32 = vmul.f32 %v26, %v31
    %v33 = vadd.f32 %v22, %v32
    %34 = vset.pattern.permute.xlu0 1
    %35 = vperm.xlu0 %34, %v15
    %v36 = vpop.permute.xlu0 %35
    %v38 = vlaneseq
    %v39 = vshrl.u32 %v38, 7
    %v40 = vsub.s32 1, %v39
    %v41 = vrot.slane %v16, %v40
    %v42 = vmul.f32 %v36, %v41
    %v43 = vadd.f32 %v33, %v42
    %44 = vset.pattern.permute.xlu0 2
    %45 = vperm.xlu0 %44, %v15
    %v46 = vpop.permute.xlu0 %45
    %v48 = vlaneseq
    %v49 = vshrl.u32 %v48, 7
    %v50 = vsub.s32 2, %v49
    %v51 = vrot.slane %v16, %v50
    %v52 = vmul.f32 %v46, %v51
    %v53 = vadd.f32 %v43, %v52
    %v54 = vmax.f32 %v53, 0.0
    %vm55 = vcmask 64512
    %56 = vst.msk [vmem:[#allocation2] sm:$0xff] %vm55, %v54
    // Predicated region
    $region14: #{tpu_custom_call.1} parent=1 // pred_check
      _
    $region15: #{tpu_custom_call.1} parent=1 // pred_check_branch
      %58 = sbr.rel (0) target = $region17
    $region16: #{tpu_custom_call.1} parent=1 // pred_region
      %s60 = ssub.s32 128, 128
      %61 = vsyncadd [#allocation3], %s60
      %s63 = sshll.u32 [#allocation2], 4
      %s64 = int_to_ptr.vmem [resolvable:$true] %s63
      %66 = dma.vmem_to_hbm [thread:$0]  %s64, 128, %s3, [#allocation3]
    $region17: #{tpu_custom_call.1} parent=1 // pred_fallthru
      _
    // Predicated region
    $region18: #{tpu_custom_call.1} parent=1 // pred_check
      _
    $region19: #{tpu_custom_call.1} parent=1 // pred_check_branch
      %68 = sbr.rel (0) target = $region21
    $region20: #{tpu_custom_call.1} parent=1 // pred_region
      %69 = dma.done [#allocation3], 128
    $region21: #{tpu_custom_call.1} parent=1 // pred_fallthru
      _
    %70 = vsyncpa [#allocation3], 1

</llo_original>
